<compile_context>
chip_gen: v6e
topology: v6e:2x2x1
jax: 0.10.0
libtpu: 0.0.40
codegen_flags: <defaults>
</compile_context>

<pallas_src>
import functools

import jax
import jax.numpy as jnp
from jax.experimental import pallas as pl
from jax.experimental.pallas import tpu as pltpu


# ------------------------------- vmem budget -------------------------------- #

@functools.lru_cache(maxsize=None)
def _default_vmem_limit():
    """~75% of physical VMEM: ~96 MiB on v5e/v6e (128 MiB parts), ~48 MiB on v7x."""
    try:
        cap = pltpu.get_tpu_info().vmem_capacity_bytes
    except Exception:
        cap = 64 * 1024 * 1024          # conservative fallback (safe on every gen)
    return max(32 * 1024 * 1024, min(int(cap) * 3 // 4, 100 * 1024 * 1024))


# ----------------------------- encoder kernels ------------------------------ #

def _encoder_kernel_fused(x_ref, w_ref, bias_ref, out_ref):
    # tk == d_model: one MXU pass per output tile, no accumulator, no reduction axis.
    out_ref[...] = (
        jnp.dot(x_ref[...], w_ref[...], preferred_element_type=jnp.float32)
        + bias_ref[...]
    ).astype(out_ref.dtype)


def _encoder_kernel_acc_out(x_ref, w_ref, bias_ref, out_ref):
    # tk < d_model, f32 output: out_ref doubles as the accumulator (it is resident
    # across the kk axis because its BlockSpec ignores kk).
    kk = pl.program_id(2)

    @pl.when(kk == 0)
    def _init():
        out_ref[...] = jnp.broadcast_to(bias_ref[...], out_ref.shape)

    out_ref[...] += jnp.dot(x_ref[...], w_ref[...], preferred_element_type=jnp.float32)


def _encoder_kernel_acc_scratch(x_ref, w_ref, bias_ref, out_ref, acc_ref):
    # tk < d_model, non-f32 output: keep an f32 VMEM accumulator, cast at the end.
    kk = pl.program_id(2)

    @pl.when(kk == 0)
    def _init():
        acc_ref[...] = jnp.broadcast_to(bias_ref[...], acc_ref.shape)

    acc_ref[...] += jnp.dot(x_ref[...], w_ref[...], preferred_element_type=jnp.float32)

    @pl.when(kk == pl.num_programs(2) - 1)
    def _finalize():
        out_ref[...] = acc_ref[...].astype(out_ref.dtype)


def encoder_forward(x, w_enc_t, fused_bias, *, tm=512, tn=1024, tk=None,
                    out_dtype=jnp.float32, vmem_limit_bytes=None):
    """latents_pre_act = x @ w_enc_t + fused_bias, tiled on the MXU.

    fused_bias = latent_bias - pre_bias @ w_enc_t (computed once by the caller).
    Tile notes: keep tm/tn multiples of 128 (v5e) / 256 (v6e, v7x); tk defaults to the
    full d_model when d_model <= 4096 so there is no reduction axis.  On v7x keep at
    least 2 blocks along a 'parallel' axis so both TensorCores stay busy.
    """
    B, D = x.shape
    N = w_enc_t.shape[1]
    tm, tn = min(tm, B), min(tn, N)
    if tk is None:
        tk = D if D <= 4096 else 512
    tk = min(tk, D)
    assert B % tm == 0 and N % tn == 0 and D % tk == 0
    if vmem_limit_bytes is None:
        vmem_limit_bytes = _default_vmem_limit()

    bias2d = fused_bias.reshape(1, N).astype(jnp.float32)
    cost = pl.CostEstimate(
        flops=2 * B * D * N,
        transcendentals=0,
        bytes_accessed=(B * D * x.dtype.itemsize + D * N * w_enc_t.dtype.itemsize
                        + B * N * jnp.dtype(out_dtype).itemsize + N * 4))

    if tk == D:
        # No reduction axis: 2-D parallel grid.
        grid = (B // tm, N // tn)
        return pl.pallas_call(
            _encoder_kernel_fused,
            out_shape=jax.ShapeDtypeStruct((B, N), out_dtype),
            grid_spec=pltpu.PrefetchScalarGridSpec(
                num_scalar_prefetch=0,
                grid=grid,
                in_specs=[
                    pl.BlockSpec((tm, D), lambda i, j: (i, 0)),    # x
                    pl.BlockSpec((D, tn), lambda i, j: (0, j)),    # W_enc^T
                    pl.BlockSpec((1, tn), lambda i, j: (0, j)),    # fused bias
                ],
                out_specs=pl.BlockSpec((tm, tn), lambda i, j: (i, j))),
            compiler_params=pltpu.CompilerParams(
                dimension_semantics=("parallel", "parallel"),
                vmem_limit_bytes=vmem_limit_bytes),
            cost_estimate=cost,
        )(x, w_enc_t, bias2d)

    grid = (B // tm, N // tn, D // tk)
    f32_out = jnp.dtype(out_dtype) == jnp.dtype(jnp.float32)
    kernel = _encoder_kernel_acc_out if f32_out else _encoder_kernel_acc_scratch
    scratch = [] if f32_out else [pltpu.VMEM((tm, tn), jnp.float32)]
    return pl.pallas_call(
        kernel,
        out_shape=jax.ShapeDtypeStruct((B, N), out_dtype),
        grid_spec=pltpu.PrefetchScalarGridSpec(
            num_scalar_prefetch=0,
            grid=grid,
            in_specs=[
                pl.BlockSpec((tm, tk), lambda i, j, kk: (i, kk)),   # x
                pl.BlockSpec((tk, tn), lambda i, j, kk: (kk, j)),   # W_enc^T
                pl.BlockSpec((1, tn), lambda i, j, kk: (0, j)),     # fused bias
            ],
            out_specs=pl.BlockSpec((tm, tn), lambda i, j, kk: (i, j)),
            scratch_shapes=scratch),
        compiler_params=pltpu.CompilerParams(
            dimension_semantics=("parallel", "parallel", "arbitrary"),
            vmem_limit_bytes=vmem_limit_bytes),
        cost_estimate=cost,
    )(x, w_enc_t, bias2d)


# --------------------------- gather-decoder kernel -------------------------- #

def _decoder_gather_kernel(inds_smem, vals_ref, w_hbm, pre_b_ref, out_ref,
                           slab, sem, *, k, tm):
    # inds_smem : (B*k,) int32 scalar-prefetched into SMEM (flat -> tiny padding)
    # vals_ref  : (tm, k) f32 (already relu'd top-k values)
    # w_hbm     : (n_dirs, D) decoder weight, resident in HBM (memory_space=ANY)
    # slab      : VMEM (2, k, tm, D) double-buffered gather slab; sem: DMA((2,)).
    tile = pl.program_id(0)
    n_tiles = pl.num_programs(0)
    slot = tile % 2

    def issue(t, s):
        base = t * (tm * k)
        # Statically unrolled: the k SMEM index reads + k DMA starts per row pack into
        # the scalar / vector-misc slots.  TODO(synk): switch to a partially-unrolled
        # lax.fori_loop when tm*k is large enough to hurt compile time or exceed the
        # DMA descriptor-queue depth.
        for r in range(tm):
            row = base + r * k
            for j in range(k):
                idx = inds_smem[row + j]
                pltpu.make_async_copy(w_hbm.at[idx], slab.at[s, j, r],
                                      sem.at[s]).start()

    @pl.when(tile == 0)
    def _prime():
        issue(0, 0)

    # Prefetch the next tile's rows into the other slot *before* waiting, so tile i+1's
    # gather DMAs overlap tile i's wait + FMAs (and the SMEM reads sit before the wait).
    @pl.when(tile + 1 < n_tiles)
    def _prefetch():
        issue(tile + 1, 1 - slot)

    # One wait sized to the whole slab slot: DMA semaphores count bytes, and the tm*k
    # row copies above sum to exactly bytes(slab[slot]).
    pltpu.make_async_copy(slab.at[slot], slab.at[slot], sem.at[slot]).wait()

    # recons[b, :] = pre_bias + sum_j vals[b, j] * W_dec[inds[b, j], :]
    acc = jnp.broadcast_to(pre_b_ref[...].astype(jnp.float32), out_ref.shape)
    for j in range(k):   # k small & static -> unrolled VPU FMAs
        acc = acc + (vals_ref[:, j:j + 1].astype(jnp.float32)
                     * slab[slot, j].astype(jnp.float32))
    out_ref[...] = acc.astype(out_ref.dtype)


def decode_sparse(inds, vals, w_dec_t, pre_bias, *, tm=128, vmem_limit_bytes=None):
    """recons[b,:] = sum_j vals[b,j] * w_dec_t[inds[b,j], :] + pre_bias (gather decode)."""
    B, k = inds.shape
    N, D = w_dec_t.shape
    tm = min(tm, B)
    assert B % tm == 0
    if vmem_limit_bytes is None:
        vmem_limit_bytes = _default_vmem_limit()

    inds_flat = inds.reshape(-1).astype(jnp.int32)   # flat -> SMEM = next_pow2(4*B*k) B
    kernel = functools.partial(_decoder_gather_kernel, k=k, tm=tm)
    return pl.pallas_call(
        kernel,
        out_shape=jax.ShapeDtypeStruct((B, D), jnp.float32),
        grid_spec=pltpu.PrefetchScalarGridSpec(
            num_scalar_prefetch=1,                        # flat inds -> SMEM
            grid=(B // tm,),
            in_specs=[
                pl.BlockSpec((tm, k), lambda i, inds_ref: (i, 0)),   # vals
                pl.BlockSpec(memory_space=pl.ANY),                   # W_dec^T in HBM
                pl.BlockSpec((1, D), lambda i, inds_ref: (0, 0)),    # pre_bias
            ],
            out_specs=pl.BlockSpec((tm, D), lambda i, inds_ref: (i, 0)),
            scratch_shapes=[
                pltpu.VMEM((2, k, tm, D), w_dec_t.dtype),            # double buffer
                pltpu.SemaphoreType.DMA((2,)),
            ],
        ),
        # "arbitrary": the cross-tile prefetch chain (scratch slab + semaphores) needs
        # sequential grid order; splitting this axis across cores would deadlock.
        compiler_params=pltpu.CompilerParams(
            dimension_semantics=("arbitrary",),
            vmem_limit_bytes=vmem_limit_bytes),
        cost_estimate=pl.CostEstimate(
            flops=2 * B * k * D,
            transcendentals=0,
            bytes_accessed=(B * k * (D * w_dec_t.dtype.itemsize + 4)
                            + B * D * 4 + D * 4)),
    )(inds_flat, vals, w_dec_t, pre_bias.reshape(1, D))


# ------------------------------ forward glue -------------------------------- #

def fast_autoencoder_forward(x, params, stats_last_nonzero, *, k, auxk,
                             dead_steps_threshold,
                             enc_tiles=(512, 1024, None), dec_tm=128,
                             compute_dtype=jnp.float32,
                             latents_dtype=jnp.float32):
    """Functional equivalent of FastAutoencoder.forward.

    Returns (recons + pre_bias, info, new_stats_last_nonzero).
    compute_dtype=bf16 halves weight/activation HBM streams (f32 MXU accumulation);
    latents_dtype=bf16 halves the (B, n_dirs) latent round-trip (largest win on v5e).
    """
    w_enc_t, w_dec_t, pre_bias, latent_bias = params

    # Fold pre_bias into the encoder bias term (done once, in f32):
    #   (x - pre_bias) @ W + latent_bias == x @ W + (latent_bias - pre_bias @ W)
    fused_bias = (latent_bias.astype(jnp.float32)
                  - pre_bias.astype(jnp.float32) @ w_enc_t.astype(jnp.float32))

    xc = x.astype(compute_dtype)
    w_enc_c = w_enc_t.astype(compute_dtype)
    w_dec_c = w_dec_t.astype(compute_dtype)

    # --- encoder (Pallas, tiled) ---
    tm, tn, tk = enc_tiles
    latents_pre_act = encoder_forward(xc, w_enc_c, fused_bias, tm=tm, tn=tn, tk=tk,
                                      out_dtype=latents_dtype)

    # --- top-k + stats buffer update (plain JAX glue) ---
    vals, inds = jax.lax.top_k(latents_pre_act, k)          # (B, k), (B, k)
    n_dirs = stats_last_nonzero.shape[0]
    tmp = jnp.zeros((n_dirs,), stats_last_nonzero.dtype).at[inds.reshape(-1)].add(
        (vals > 0.001).astype(stats_last_nonzero.dtype).reshape(-1))
    new_stats = stats_last_nonzero * (1 - jnp.minimum(tmp, 1)) + 1

    # --- auxk branch (uses the updated stats, as in the torch code) ---
    auxk_vals, auxk_inds = None, None
    if auxk is not None:
        dead_mask = (new_stats > dead_steps_threshold).astype(latents_pre_act.dtype)
        masked_latents = latents_pre_act * dead_mask[None, :]
        auxk_vals, auxk_inds = jax.lax.top_k(masked_latents, auxk)

    # --- decode (Pallas gather decoder) + pre_bias ---
    latents = jax.nn.relu(vals).astype(jnp.float32)
    recons_plus_bias = decode_sparse(inds.astype(jnp.int32), latents, w_dec_c,
                                     pre_bias, tm=dec_tm)

    info = {
        'auxk_inds': auxk_inds,
        'auxk_vals': jax.nn.relu(auxk_vals) if auxk_vals is not None else None,
    }
    return recons_plus_bias, info, new_stats


# --------------------------- pure-JAX reference ----------------------------- #

def _reference_forward(x, params, stats_last_nonzero, *, k, auxk, dead_steps_threshold):
    w_enc_t, w_dec_t, pre_bias, latent_bias = params
    lat = (x - pre_bias[None, :]) @ w_enc_t + latent_bias[None, :]
    vals, inds = jax.lax.top_k(lat, k)
    n_dirs = stats_last_nonzero.shape[0]
    tmp = jnp.zeros((n_dirs,), stats_last_nonzero.dtype).at[inds.reshape(-1)].add(
        (vals > 0.001).astype(stats_last_nonzero.dtype).reshape(-1))
    new_stats = stats_last_nonzero * (1 - jnp.minimum(tmp, 1)) + 1
    latents = jax.nn.relu(vals)
    dense = jnp.zeros((x.shape[0], n_dirs), jnp.float32)
    dense = dense.at[jnp.arange(x.shape[0])[:, None], inds].set(latents)
    recons = dense @ w_dec_t + pre_bias[None, :]
    return recons, new_stats


# --------------------------------- main ------------------------------------ #

if __name__ == "__main__":
    # Small but TPU-aligned shapes (128-multiple batch / lane dims).
    B, d_model, n_dirs = 128, 256, 512
    k, auxk, dead_steps_threshold = 4, 8, 3

    key = jax.random.PRNGKey(0)
    k1, k2, k3, k4 = jax.random.split(key, 4)

    # torch: encoder.weight is (n_dirs, d_model); decoder.weight = encoder.weight.T,
    # then column-normalized along dim=0 (unit_norm_decoder_).
    w_enc = jax.random.normal(k1, (n_dirs, d_model), jnp.float32) * 0.1
    w_dec = w_enc.T                                                  # (d_model, n_dirs)
    w_dec = w_dec / jnp.linalg.norm(w_dec, axis=0, keepdims=True)

    # Kernel layouts (see "# Layout" comment at top).
    w_enc_t = w_enc.T            # (d_model, n_dirs)
    w_dec_t = w_dec.T            # (n_dirs, d_model)

    pre_bias = jax.random.normal(k2, (d_model,), jnp.float32) * 0.05
    latent_bias = jax.random.normal(k3, (n_dirs,), jnp.float32) * 0.05

    stats_last_nonzero = (jnp.arange(n_dirs, dtype=jnp.int32) % 7)

    x = jax.random.normal(k4, (B, d_model), jnp.float32)
    params = (w_enc_t, w_dec_t, pre_bias, latent_bias)

    # --- Run 1: f32, deliberately small tiles so the demo exercises the 3-D
    #     accumulating encoder grid (2,2,2) and a 4-step double-buffered decoder grid.
    recons, info, new_stats = fast_autoencoder_forward(
        x, params, stats_last_nonzero,
        k=k, auxk=auxk, dead_steps_threshold=dead_steps_threshold,
        enc_tiles=(64, 256, 128), dec_tm=32,
        compute_dtype=jnp.float32, latents_dtype=jnp.float32)
    jax.block_until_ready(recons)
    jax.block_until_ready(new_stats)
    if info['auxk_vals'] is not None:
        jax.block_until_ready(info['auxk_vals'])

    # Correctness check against a pure-JAX reference.
    ref_recons, ref_stats = _reference_forward(
        x, params, stats_last_nonzero,
        k=k, auxk=auxk, dead_steps_threshold=dead_steps_threshold)
    assert recons.shape == (B, d_model) and recons.dtype == jnp.float32
    assert info['auxk_inds'].shape == (B, auxk)
    assert info['auxk_vals'].shape == (B, auxk)
    assert jnp.all(new_stats == ref_stats)
    assert jnp.allclose(recons, ref_recons, rtol=1e-3, atol=1e-3)

    # --- Run 2: default tiles (tk = d_model -> single-pass encoder kernel), bf16
    #     compute + bf16 latents, 2-step double-buffered decoder.  bf16 top-k can
    #     legitimately pick different near-tied indices, so only sanity checks here.
    recons_bf16, info2, stats2 = fast_autoencoder_forward(
        x, params, stats_last_nonzero,
        k=k, auxk=auxk, dead_steps_threshold=dead_steps_threshold,
        dec_tm=64, compute_dtype=jnp.bfloat16, latents_dtype=jnp.bfloat16)
    jax.block_until_ready(recons_bf16)
    assert recons_bf16.shape == (B, d_model)
    assert stats2.shape == (n_dirs,)
    assert bool(jnp.all(jnp.isfinite(recons_bf16)))

    print("KERNEL_OK")
</pallas_src>

<mosaic_0001>
module attributes {stable_mosaic.version = 11 : i64} {
  func.func @_encoder_kernel_acc_out(%arg0: i32, %arg1: i32, %arg2: i32, %arg3: memref<64x128xf32, #tpu.memory_space<vmem>>, %arg4: memref<128x256xf32, #tpu.memory_space<vmem>>, %arg5: memref<1x256xf32, #tpu.memory_space<vmem>>, %arg6: memref<64x256xf32, #tpu.memory_space<vmem>>) attributes {dimension_semantics = [#tpu.dimension_semantics<parallel>, #tpu.dimension_semantics<parallel>, #tpu.dimension_semantics<arbitrary>], iteration_bounds = array<i64: 2, 2, 2>, scalar_prefetch = 0 : i64, scratch_operands = 0 : i64, tpu.core_type = #tpu.core_type<tc>, window_params = [{transform_indices = @transform_0, window_bounds = array<i64: 64, 128>}, {transform_indices = @transform_1, window_bounds = array<i64: 128, 256>}, {transform_indices = @transform_2, window_bounds = array<i64: 1, 256>}, {transform_indices = @transform_3, window_bounds = array<i64: 64, 256>}]} {
    %c0_i32 = arith.constant 0 : i32
    %0 = arith.cmpi eq, %arg2, %c0_i32 : i32
    %1 = arith.extui %0 : i1 to i32
    %c0_i32_0 = arith.constant 0 : i32
    %2 = arith.cmpi ne, %1, %c0_i32_0 : i32
    scf.if %2 {
      %c0_8 = arith.constant 0 : index
      %c0_9 = arith.constant 0 : index
      %9 = vector.load %arg5[%c0_8, %c0_9] : memref<1x256xf32, #tpu.memory_space<vmem>>, vector<1x256xf32>
      %10 = vector.shape_cast %9 : vector<1x256xf32> to vector<1x256xf32>
      %11 = vector.broadcast %10 : vector<1x256xf32> to vector<64x256xf32>
      %c0_10 = arith.constant 0 : index
      %c0_11 = arith.constant 0 : index
      %12 = vector.load %arg6[%c0_10, %c0_11] : memref<64x256xf32, #tpu.memory_space<vmem>>, vector<64x256xf32>
      tpu.vector_store %arg6[%c0_10, %c0_11], %11 {strides = array<i32>} : memref<64x256xf32, #tpu.memory_space<vmem>>, vector<64x256xf32>,
    } else {
    }
    %c0 = arith.constant 0 : index
    %c0_1 = arith.constant 0 : index
    %3 = vector.load %arg6[%c0, %c0_1] : memref<64x256xf32, #tpu.memory_space<vmem>>, vector<64x256xf32>
    %c0_2 = arith.constant 0 : index
    %c0_3 = arith.constant 0 : index
    %4 = vector.load %arg3[%c0_2, %c0_3] : memref<64x128xf32, #tpu.memory_space<vmem>>, vector<64x128xf32>
    %c0_4 = arith.constant 0 : index
    %c0_5 = arith.constant 0 : index
    %5 = vector.load %arg4[%c0_4, %c0_5] : memref<128x256xf32, #tpu.memory_space<vmem>>, vector<128x256xf32>
    %cst = arith.constant dense<0.000000e+00> : vector<64x256xf32>
    %6 = tpu.matmul %4, %5, %cst {dimension_numbers = #tpu.dot_dimension_numbers<[1], [0], [0], [1], [0, 0, 1, 1], [], []>} : vector<64x128xf32>, vector<128x256xf32>, vector<64x256xf32> -> vector<64x256xf32>
    %7 = arith.addf %3, %6 : vector<64x256xf32>
    %c0_6 = arith.constant 0 : index
    %c0_7 = arith.constant 0 : index
    %8 = vector.load %arg6[%c0_6, %c0_7] : memref<64x256xf32, #tpu.memory_space<vmem>>, vector<64x256xf32>
    tpu.vector_store %arg6[%c0_6, %c0_7], %7 {strides = array<i32>} : memref<64x256xf32, #tpu.memory_space<vmem>>, vector<64x256xf32>,
    return
  }
  func.func @transform_0(%arg0: i32, %arg1: i32, %arg2: i32) -> (i32, i32) {
    %c0_i32 = arith.constant 0 : i32
    return %arg0, %arg2 : i32, i32
  }
  func.func @transform_1(%arg0: i32, %arg1: i32, %arg2: i32) -> (i32, i32) {
    %c0_i32 = arith.constant 0 : i32
    return %arg2, %arg1 : i32, i32
  }
  func.func @transform_2(%arg0: i32, %arg1: i32, %arg2: i32) -> (i32, i32) {
    %c0_i32 = arith.constant 0 : i32
    %c0_i32_0 = arith.constant 0 : i32
    return %c0_i32, %arg1 : i32, i32
  }
  func.func @transform_3(%arg0: i32, %arg1: i32, %arg2: i32) -> (i32, i32) {
    %c0_i32 = arith.constant 0 : i32
    return %arg0, %arg1 : i32, i32
  }
}

</mosaic_0001>

<llo_original>
// kernel: tpu_custom_call.1
$region0: #{tpu_custom_call.1}
  #allocation0 [shape = 'u32[]', space=smem, size = 0x4, offset = 0x4, fixed_abs, tag = 'smem constant byte address 0x4 - core index']
  #allocation1 [shape = 'u32[144,128]{1,0:T(1,128)}', space=vmem, size = 0x12000, scoped, tag = 'internal scratch']
  %s0 = inlined_call_operand.hbm [shape: f32[128,256], index: 0, kind: input, shape index: {}]
  %s1 = inlined_call_operand.hbm [shape: f32[256,512], index: 1, kind: input, shape index: {}]
  %s2 = inlined_call_operand.hbm [shape: f32[1,512], index: 2, kind: input, shape index: {}]
  %s3 = inlined_call_operand.hbm [shape: f32[128,512], index: 3, kind: output, shape index: {}]
  %s4 = sld [smem:[#allocation0]]
  $region61: #{tpu_custom_call.1} parent=0
    _
  %s6 = ssub.s32 1, %s4
  %s7 = scalar_select 0, %s6, %s4
  $region1: #{tpu_custom_call.1} parent=0
    #allocation2 [shape = 'u8[65536]{0}', space=vmem, size = 0x10000, scoped, tag = 'input window, operand 0']
    #allocation3 [shape = 's32[2]{0}', space=sflag, size = 0x8, scoped, tag = 'scoped memory for tpu_custom_call.1']
    #allocation4 [shape = 's32[2]{0}', space=sflag, size = 0x8, scoped, tag = 'scoped memory for tpu_custom_call.1']
    #allocation5 [shape = 'u8[262144]{0}', space=vmem, size = 0x40000, scoped, tag = 'input window, operand 1']
    #allocation6 [shape = 's32[2]{0}', space=sflag, size = 0x8, scoped, tag = 'scoped memory for tpu_custom_call.1']
    #allocation7 [shape = 'u8[2048]{0}', space=vmem, size = 0x800, scoped, tag = 'input window, operand 2']
    #allocation8 [shape = 'u8[131072]{0}', space=vmem, size = 0x20000, scoped, tag = 'output window, operand 0']
    %8 = vsyncpa [#allocation3], 0
    %s9 = scalar_lea.sflag [#allocation3], 1
    %10 = vsyncpa %s9, 0
    %11 = vsyncpa [#allocation6], 0
    %s12 = scalar_lea.sflag [#allocation6], 1
    %13 = vsyncpa %s12, 0
    %14 = vsyncpa [#allocation4], 0
    %s15 = scalar_lea.sflag [#allocation4], 1
    %16 = vsyncpa %s15, 0
    loop: start=0, step=1, limit=10
    $region2: #{tpu_custom_call.1} parent=1 // loop_pre_header
      _
    $region3: #{tpu_custom_call.1} parent=1 // loop_header
      %s18 = sphi 0, %s22
      %p19 = scmp.ge.s32.totalorder %s18, 10
      %s25 = sphi 0, %s44
      %s26 = sphi 0, %s40
      %s27 = sphi 0, %s36
      %s28 = sphi 0, %s25
      %s29 = sphi 0, %s26
      %s30 = sphi 0, %s27
      %s31 = sphi 0, %s28
      %s32 = sphi 0, %s29
      %s33 = sphi 0, %s30
      %s49 = sphi 0, %s51
      %s52 = sphi 0, %s49
      %s53 = sphi 0, %s52
      %s69 = sphi 0, %s53
      %s77 = sphi 0, %s79
      %s80 = sphi 0, %s77
      %s81 = sphi 0, %s80
      %s97 = sphi 0, %s81
      %s103 = sphi 0, %s105
      %s106 = sphi 0, %s103
      %s107 = sphi 0, %s106
      %s123 = sphi 0, %s107
      %s131 = sphi 0, %s133
      %s134 = sphi 0, %s131
      %s135 = sphi 0, %s134
      %s151 = sphi 0, %s135
    $region4: #{tpu_custom_call.1} parent=1 // loop_header_branch
      %21 = sbr.rel (%p19) target = $region8
    $region5: #{tpu_custom_call.1} parent=1 // loop_body
      %s23 = ssub.s32 %s18, 1
      %s24 = ssub.s32 %s18, 2
      %s34 = sadd.s32 1, %s27
      %p35 = scmp.ge.s32.totalorder %s34, 2
      %s36 = scalar_select %p35, 0, %s34
      %s37 = sadd.s32 1, %s26
      %s38 = scalar_select %p35, %s37, %s26
      %p39 = scmp.ge.s32.totalorder %s38, 2
      %s40 = scalar_select %p39, 0, %s38
      %s41 = sadd.s32 1, %s25
      %s42 = scalar_select %p39, %s41, %s25
      %p43 = scmp.ge.s32.totalorder %s42, 2
      %s44 = scalar_select %p43, 0, %s42
      %s45 = ssub.s32 %s25, %s44
      %s46 = ssub.s32 %s27, %s36
      %s47 = sor.u32 %s45, %s46
      %p48 = scmp.eq.s32.totalorder %s47, 0
      %s50 = sadd.s32 %s49, 1
      %s51 = scalar_select %p48, %s49, %s50
      %p54 = pneg %p48
      %p55 = scmp.eq.s32.totalorder %s18, 7
      %p56 = por %p54, %p55
      %p57 = scmp.ne.s32.totalorder %s49, %s52
      %p58 = scmp.eq.s32.totalorder %s18, 0
      %p59 = por %p57, %p58
      %p60 = scmp.ne.s32.totalorder %s49, %s52
      %p61 = scmp.eq.s32.totalorder %s23, 7
      %p62 = por %p60, %p61
      %p63 = scmp.ne.s32.totalorder %s52, %s53
      %p64 = scmp.eq.s32.totalorder %s23, 0
      %p65 = por %p63, %p64
      %p66 = scmp.ne.s32.totalorder %s52, %s53
      %p67 = scmp.eq.s32.totalorder %s24, 7
      %p68 = por %p66, %p67
      %p70 = scmp.ne.s32.totalorder %s53, %s69
      %p71 = scmp.eq.s32.totalorder %s24, 0
      %p72 = por %p70, %p71
      %s73 = ssub.s32 %s27, %s36
      %s74 = ssub.s32 %s26, %s40
      %s75 = sor.u32 %s73, %s74
      %p76 = scmp.eq.s32.totalorder %s75, 0
      %s78 = sadd.s32 %s77, 1
      %s79 = scalar_select %p76, %s77, %s78
      %p82 = pneg %p76
      %p83 = scmp.eq.s32.totalorder %s18, 7
      %p84 = por %p82, %p83
      %p85 = scmp.ne.s32.totalorder %s77, %s80
      %p86 = scmp.eq.s32.totalorder %s18, 0
      %p87 = por %p85, %p86
      %p88 = scmp.ne.s32.totalorder %s77, %s80
      %p89 = scmp.eq.s32.totalorder %s23, 7
      %p90 = por %p88, %p89
      %p91 = scmp.ne.s32.totalorder %s80, %s81
      %p92 = scmp.eq.s32.totalorder %s23, 0
      %p93 = por %p91, %p92
      %p94 = scmp.ne.s32.totalorder %s80, %s81
      %p95 = scmp.eq.s32.totalorder %s24, 7
      %p96 = por %p94, %p95
      %p98 = scmp.ne.s32.totalorder %s81, %s97
      %p99 = scmp.eq.s32.totalorder %s24, 0
      %p100 = por %p98, %p99
      %s101 = ssub.s32 %s26, %s40
      %p102 = scmp.eq.s32.totalorder %s101, 0
      %s104 = sadd.s32 %s103, 1
      %s105 = scalar_select %p102, %s103, %s104
      %p108 = pneg %p102
      %p109 = scmp.eq.s32.totalorder %s18, 7
      %p110 = por %p108, %p109
      %p111 = scmp.ne.s32.totalorder %s103, %s106
      %p112 = scmp.eq.s32.totalorder %s18, 0
      %p113 = por %p111, %p112
      %p114 = scmp.ne.s32.totalorder %s103, %s106
      %p115 = scmp.eq.s32.totalorder %s23, 7
      %p116 = por %p114, %p115
      %p117 = scmp.ne.s32.totalorder %s106, %s107
      %p118 = scmp.eq.s32.totalorder %s23, 0
      %p119 = por %p117, %p118
      %p120 = scmp.ne.s32.totalorder %s106, %s107
      %p121 = scmp.eq.s32.totalorder %s24, 7
      %p122 = por %p120, %p121
      %p124 = scmp.ne.s32.totalorder %s107, %s123
      %p125 = scmp.eq.s32.totalorder %s24, 0
      %p126 = por %p124, %p125
      %s127 = ssub.s32 %s25, %s44
      %s128 = ssub.s32 %s26, %s40
      %s129 = sor.u32 %s127, %s128
      %p130 = scmp.eq.s32.totalorder %s129, 0
      %s132 = sadd.s32 %s131, 1
      %s133 = scalar_select %p130, %s131, %s132
      %p136 = pneg %p130
      %p137 = scmp.eq.s32.totalorder %s18, 7
      %p138 = por %p136, %p137
      %p139 = scmp.ne.s32.totalorder %s131, %s134
      %p140 = scmp.eq.s32.totalorder %s18, 0
      %p141 = por %p139, %p140
      %p142 = scmp.ne.s32.totalorder %s131, %s134
      %p143 = scmp.eq.s32.totalorder %s23, 7
      %p144 = por %p142, %p143
      %p145 = scmp.ne.s32.totalorder %s134, %s135
      %p146 = scmp.eq.s32.totalorder %s23, 0
      %p147 = por %p145, %p146
      %p148 = scmp.ne.s32.totalorder %s134, %s135
      %p149 = scmp.eq.s32.totalorder %s24, 7
      %p150 = por %p148, %p149
      %p152 = scmp.ne.s32.totalorder %s135, %s151
      %p153 = scmp.eq.s32.totalorder %s24, 0
      %p154 = por %p152, %p153
      %p155 = scmp.le.s32.totalorder 1, %s18
      %p156 = scmp.lt.s32.totalorder %s18, 9
      %p157 = pnand %p155, %p156
      %p158 = pneg %p157
      // Predicated region
      $region9: #{tpu_custom_call.1} parent=5 // pred_check
        _
      $region10: #{tpu_custom_call.1} parent=5 // pred_check_branch
        %160 = sbr.rel (%p157) target = $region12
      $region11: #{tpu_custom_call.1} parent=5 // pred_region
        %s161 = ssub.s32 %s18, 1
      $region12: #{tpu_custom_call.1} parent=5 // pred_fallthru
        _
      %p162 = scmp.lt.s32.totalorder %s18, 8
      // Predicated region
      $region13: #{tpu_custom_call.1} parent=5 // pred_check
        %p163 = pneg %p162
      $region14: #{tpu_custom_call.1} parent=5 // pred_check_branch
        %165 = sbr.rel (%p163) target = $region16
      $region15: #{tpu_custom_call.1} parent=5 // pred_region
        // Predicated region
        $region17: #{tpu_custom_call.1} parent=15 // pred_check
          %p166 = pneg %p59
        $region18: #{tpu_custom_call.1} parent=15 // pred_check_branch
          %168 = sbr.rel (%p166) target = $region20
        $region19: #{tpu_custom_call.1} parent=15 // pred_region
          %s169 = sand.u32 %s49, 1
          %s170 = scalar_lea.sflag [#allocation3], %s169
          %s171 = sand.u32 %s49, 1
          %s172 = smul.addr %s171, 64
          %s173 = scalar_lea.vmem [#allocation2], %s172
          %s174 = smul.u32 8, %s25
          %s176 = ssub.s32 1024, 1024
          %177 = vsyncadd %s170, %s176
          %s178 = smul.addr %s174, 2
          %s179 = sadd.s32 %s27, %s178
          %s180 = smul.addr %s179, 128
          %s181 = scalar_lea.hbm %s0, %s180
          %s182 = sshll.u32 %s173, 4
          %s183 = int_to_ptr.vmem [resolvable:$true] %s182
          %188 = dma.hbm_to_vmem [thread:$0]  %s181, 1024, %s183, %s170, 256, 128, 8
        $region20: #{tpu_custom_call.1} parent=15 // pred_fallthru
          _
        // Predicated region
        $region21: #{tpu_custom_call.1} parent=15 // pred_check
          %p189 = pneg %p87
        $region22: #{tpu_custom_call.1} parent=15 // pred_check_branch
          %191 = sbr.rel (%p189) target = $region24
        $region23: #{tpu_custom_call.1} parent=15 // pred_region
          %s192 = sand.u32 %s18, 1
          %s193 = scalar_lea.sflag [#allocation6], %s192
          %s194 = sand.u32 %s77, 1
          %s195 = smul.addr %s194, 256
          %s196 = scalar_lea.vmem [#allocation5], %s195
          %s197 = smul.u32 16, %s27
          %s198 = smul.u32 2, %s26
          %s200 = ssub.s32 4096, 4096
          %201 = vsyncadd %s193, %s200
          %s202 = smul.addr %s197, 4
          %s203 = sadd.s32 %s198, %s202
          %s204 = smul.addr %s203, 128
          %s205 = scalar_lea.hbm %s1, %s204
          %s206 = sshll.u32 %s196, 4
          %s207 = int_to_ptr.vmem [resolvable:$true] %s206
          %212 = dma.hbm_to_vmem [thread:$0]  %s205, 4096, %s207, %s193, 512, 256, 16
        $region24: #{tpu_custom_call.1} parent=15 // pred_fallthru
          _
        // Predicated region
        $region25: #{tpu_custom_call.1} parent=15 // pred_check
          %p213 = pneg %p113
        $region26: #{tpu_custom_call.1} parent=15 // pred_check_branch
          %215 = sbr.rel (%p213) target = $region28
        $region27: #{tpu_custom_call.1} parent=15 // pred_region
          %s216 = sand.u32 %s18, 1
          %s217 = scalar_lea.sflag [#allocation6], %s216
          %s218 = sand.u32 %s103, 1
          %s219 = smul.addr %s218, 2
          %s220 = scalar_lea.vmem [#allocation7], %s219
          %s221 = smul.u32 2, %s26
          %s223 = ssub.s32 32, 32
          %224 = vsyncadd %s217, %s223
          %s225 = smul.addr %s221, 16
          %s226 = scalar_lea.hbm %s2, %s225
          %s228 = sshll.u32 %s220, 4
          %s229 = int_to_ptr.vmem [resolvable:$true] %s228
          %231 = dma.hbm_to_vmem [thread:$0]  %s226, 32, %s229, %s217
        $region28: #{tpu_custom_call.1} parent=15 // pred_fallthru
          _
      $region16: #{tpu_custom_call.1} parent=5 // pred_fallthru
        _
      %p232 = scmp.le.s32.totalorder 1, %s18
      %p233 = scmp.lt.s32.totalorder %s18, 9
      %p234 = pnand %p232, %p233
      %p235 = pneg %p234
      // Predicated region
      $region29: #{tpu_custom_call.1} parent=5 // pred_check
        _
      $region30: #{tpu_custom_call.1} parent=5 // pred_check_branch
        %237 = sbr.rel (%p234) target = $region32
      $region31: #{tpu_custom_call.1} parent=5 // pred_region
        %s238 = ssub.s32 %s18, 1
        %s239 = sand.u32 %s52, 1
        %s240 = scalar_lea.sflag [#allocation3], %s239
        %s241 = sand.u32 %s52, 1
        %s242 = smul.addr %s241, 64
        %s243 = scalar_lea.vmem [#allocation2], %s242
        // Predicated region
        $region33: #{tpu_custom_call.1} parent=31 // pred_check
          %p244 = pneg %p65
        $region34: #{tpu_custom_call.1} parent=31 // pred_check_branch
          %246 = sbr.rel (%p244) target = $region36
        $region35: #{tpu_custom_call.1} parent=31 // pred_region
          %247 = dma.done %s240, 1024
        $region36: #{tpu_custom_call.1} parent=31 // pred_fallthru
          _
        %s248 = sand.u32 %s23, 1
        %s249 = scalar_lea.sflag [#allocation6], %s248
        %s250 = sand.u32 %s80, 1
        %s251 = smul.addr %s250, 256
        %s252 = scalar_lea.vmem [#allocation5], %s251
        // Predicated region
        $region37: #{tpu_custom_call.1} parent=31 // pred_check
          %p253 = pneg %p93
        $region38: #{tpu_custom_call.1} parent=31 // pred_check_branch
          %255 = sbr.rel (%p253) target = $region40
        $region39: #{tpu_custom_call.1} parent=31 // pred_region
          %256 = dma.done %s249, 4096
        $region40: #{tpu_custom_call.1} parent=31 // pred_fallthru
          _
        %s257 = sand.u32 %s23, 1
        %s258 = scalar_lea.sflag [#allocation6], %s257
        %s259 = sand.u32 %s106, 1
        %s260 = smul.addr %s259, 2
        %s261 = scalar_lea.vmem [#allocation7], %s260
        // Predicated region
        $region41: #{tpu_custom_call.1} parent=31 // pred_check
          %p262 = pneg %p119
        $region42: #{tpu_custom_call.1} parent=31 // pred_check_branch
          %264 = sbr.rel (%p262) target = $region44
        $region43: #{tpu_custom_call.1} parent=31 // pred_region
          %265 = dma.done %s258, 32
        $region44: #{tpu_custom_call.1} parent=31 // pred_fallthru
          _
        %s266 = sand.u32 %s52, 1
        %s267 = scalar_lea.sflag [#allocation3], %s266
        %s268 = sand.u32 %s52, 1
        %s269 = smul.addr %s268, 64
        %s270 = scalar_lea.vmem [#allocation2], %s269
        %p271 = pneg %p65
        %p272 = pneg %p62
        %s273 = sand.u32 %s23, 1
        %s274 = scalar_lea.sflag [#allocation6], %s273
        %s275 = sand.u32 %s80, 1
        %s276 = smul.addr %s275, 256
        %s277 = scalar_lea.vmem [#allocation5], %s276
        %p278 = pneg %p93
        %p279 = pneg %p90
        %s280 = sand.u32 %s23, 1
        %s281 = scalar_lea.sflag [#allocation6], %s280
        %s282 = sand.u32 %s106, 1
        %s283 = smul.addr %s282, 2
        %s284 = scalar_lea.vmem [#allocation7], %s283
        %p285 = pneg %p119
        %p286 = pneg %p116
        %p287 = pneg %p147
        %p288 = pneg %p144
        %s289 = sand.u32 %s134, 1
        %s290 = scalar_lea.sflag [#allocation4], %s289
        %s291 = sand.u32 %s134, 1
        %s292 = smul.addr %s291, 128
        %s293 = scalar_lea.vmem [#allocation8], %s292
        %s294 = smul.u32 8, %s28
        %s295 = smul.u32 16, %s30
        %s296 = smul.u32 2, %s29
        %s297 = smul.u32 2, %s29
        %s298 = smul.u32 8, %s28
        %s299 = smul.u32 2, %s29
        %p300 = scmp.eq.s32.totalorder %s30, 0
        // Predicated region
        $region45: #{tpu_custom_call.1} parent=31 // pred_check
          %p301 = pneg %p300
        $region46: #{tpu_custom_call.1} parent=31 // pred_check_branch
          %303 = sbr.rel (%p301) target = $region48
        $region47: #{tpu_custom_call.1} parent=31 // pred_region
          %v304 = vld [vmem:[%s261] sm:$0x3]
          %v306 = vlaneseq
          %v307 = vshrl.u32 %v306, 7
          %v308 = vsub.s32 0, %v307
          %v309 = vrot.slane %v304, %v308
          %v310 = vlaneseq
          %v311 = vshrl.u32 %v310, 7
          %v312 = vsub.s32 1, %v311
          %v313 = vrot.slane %v304, %v312
          %316 = vst [vmem:[%s293] sm:$0xff] %v309
          %317 = vst [vmem:[%s293 + $0x8] sm:$0xff] %v313
          %318 = vst [vmem:[%s293 + $0x10] sm:$0xff] %v309
          %319 = vst [vmem:[%s293 + $0x18] sm:$0xff] %v313
          %320 = vst [vmem:[%s293 + $0x20] sm:$0xff] %v309
          %321 = vst [vmem:[%s293 + $0x28] sm:$0xff] %v313
          %322 = vst [vmem:[%s293 + $0x30] sm:$0xff] %v309
          %323 = vst [vmem:[%s293 + $0x38] sm:$0xff] %v313
          %324 = vst [vmem:[%s293 + $0x40] sm:$0xff] %v309
          %325 = vst [vmem:[%s293 + $0x48] sm:$0xff] %v313
          %326 = vst [vmem:[%s293 + $0x50] sm:$0xff] %v309
          %327 = vst [vmem:[%s293 + $0x58] sm:$0xff] %v313
          %328 = vst [vmem:[%s293 + $0x60] sm:$0xff] %v309
          %329 = vst [vmem:[%s293 + $0x68] sm:$0xff] %v313
          %330 = vst [vmem:[%s293 + $0x70] sm:$0xff] %v309
          %331 = vst [vmem:[%s293 + $0x78] sm:$0xff] %v313
        $region48: #{tpu_custom_call.1} parent=31 // pred_fallthru
          _
        %v332 = vld [vmem:[%s293] sm:$0xff]
        %v333 = vld [vmem:[%s293 + $0x8] sm:$0xff]
        %v334 = vld [vmem:[%s293 + $0x10] sm:$0xff]
        %v335 = vld [vmem:[%s293 + $0x18] sm:$0xff]
        %v336 = vld [vmem:[%s293 + $0x20] sm:$0xff]
        %v337 = vld [vmem:[%s293 + $0x28] sm:$0xff]
        %v338 = vld [vmem:[%s293 + $0x30] sm:$0xff]
        %v339 = vld [vmem:[%s293 + $0x38] sm:$0xff]
        %v340 = vld [vmem:[%s293 + $0x40] sm:$0xff]
        %v341 = vld [vmem:[%s293 + $0x48] sm:$0xff]
        %v342 = vld [vmem:[%s293 + $0x50] sm:$0xff]
        %v343 = vld [vmem:[%s293 + $0x58] sm:$0xff]
        %v344 = vld [vmem:[%s293 + $0x60] sm:$0xff]
        %v345 = vld [vmem:[%s293 + $0x68] sm:$0xff]
        %v346 = vld [vmem:[%s293 + $0x70] sm:$0xff]
        %v347 = vld [vmem:[%s293 + $0x78] sm:$0xff]
        %v348 = vld [vmem:[%s243] sm:$0xff]
        %v349 = vld [vmem:[%s243 + $0x8] sm:$0xff]
        %v350 = vld [vmem:[%s243 + $0x10] sm:$0xff]
        %v351 = vld [vmem:[%s243 + $0x18] sm:$0xff]
        %v352 = vld [vmem:[%s243 + $0x20] sm:$0xff]
        %v353 = vld [vmem:[%s243 + $0x28] sm:$0xff]
        %v354 = vld [vmem:[%s243 + $0x30] sm:$0xff]
        %v355 = vld [vmem:[%s243 + $0x38] sm:$0xff]
        %v356 = vld [vmem:[%s252] sm:$0xff]
        %v357 = vld [vmem:[%s252 + $0x8] sm:$0xff]
        %v358 = vld [vmem:[%s252 + $0x10] sm:$0xff]
        %v359 = vld [vmem:[%s252 + $0x18] sm:$0xff]
        %v360 = vld [vmem:[%s252 + $0x20] sm:$0xff]
        %v361 = vld [vmem:[%s252 + $0x28] sm:$0xff]
        %v362 = vld [vmem:[%s252 + $0x30] sm:$0xff]
        %v363 = vld [vmem:[%s252 + $0x38] sm:$0xff]
        %v364 = vld [vmem:[%s252 + $0x40] sm:$0xff]
        %v365 = vld [vmem:[%s252 + $0x48] sm:$0xff]
        %v366 = vld [vmem:[%s252 + $0x50] sm:$0xff]
        %v367 = vld [vmem:[%s252 + $0x58] sm:$0xff]
        %v368 = vld [vmem:[%s252 + $0x60] sm:$0xff]
        %v369 = vld [vmem:[%s252 + $0x68] sm:$0xff]
        %v370 = vld [vmem:[%s252 + $0x70] sm:$0xff]
        %v371 = vld [vmem:[%s252 + $0x78] sm:$0xff]
        %v372 = vld [vmem:[%s252 + $0x80] sm:$0xff]
        %v373 = vld [vmem:[%s252 + $0x88] sm:$0xff]
        %v374 = vld [vmem:[%s252 + $0x90] sm:$0xff]
        %v375 = vld [vmem:[%s252 + $0x98] sm:$0xff]
        %v376 = vld [vmem:[%s252 + $0xa0] sm:$0xff]
        %v377 = vld [vmem:[%s252 + $0xa8] sm:$0xff]
        %v378 = vld [vmem:[%s252 + $0xb0] sm:$0xff]
        %v379 = vld [vmem:[%s252 + $0xb8] sm:$0xff]
        %v380 = vld [vmem:[%s252 + $0xc0] sm:$0xff]
        %v381 = vld [vmem:[%s252 + $0xc8] sm:$0xff]
        %v382 = vld [vmem:[%s252 + $0xd0] sm:$0xff]
        %v383 = vld [vmem:[%s252 + $0xd8] sm:$0xff]
        %v384 = vld [vmem:[%s252 + $0xe0] sm:$0xff]
        %v385 = vld [vmem:[%s252 + $0xe8] sm:$0xff]
        %v386 = vld [vmem:[%s252 + $0xf0] sm:$0xff]
        %v387 = vld [vmem:[%s252 + $0xf8] sm:$0xff]
        %388 = vmatprep.subr.mxu0 %v387
        %389 = vmatpush1.msra.mxu0 %v386
        %390 = vmatprep.subr.mxu0 %v385
        %391 = vmatpush1.msra.mxu0 %v384
        %392 = vmatprep.subr.mxu0 %v383
        %393 = vmatpush1.msra.mxu0 %v382
        %394 = vmatprep.subr.mxu0 %v381
        %395 = vmatpush1.msra.mxu0 %v380
        %396 = vmatprep.subr.mxu0 %v379
        %397 = vmatpush1.msra.mxu0 %v378
        %398 = vmatprep.subr.mxu0 %v377
        %399 = vmatpush1.msra.mxu0 %v376
        %400 = vmatprep.subr.mxu0 %v375
        %401 = vmatpush1.msra.mxu0 %v374
        %402 = vmatprep.subr.mxu0 %v373
        %403 = vmatpush1.msra.mxu0 %v372
        %404 = vmatprep.subr.mxu0 %v371
        %405 = vmatpush1.msra.mxu0 %v370
        %406 = vmatprep.subr.mxu0 %v369
        %407 = vmatpush1.msra.mxu0 %v368
        %408 = vmatprep.subr.mxu0 %v367
        %409 = vmatpush1.msra.mxu0 %v366
        %410 = vmatprep.subr.mxu0 %v365
        %411 = vmatpush1.msra.mxu0 %v364
        %412 = vmatprep.subr.mxu0 %v363
        %413 = vmatpush1.msra.mxu0 %v362
        %414 = vmatprep.subr.mxu0 %v361
        %415 = vmatpush1.msra.mxu0 %v360
        %416 = vmatprep.subr.mxu0 %v359
        %417 = vmatpush1.msra.mxu0 %v358
        %418 = vmatprep.subr.mxu0 %v357
        %419 = vmatpush1.msra.mxu0 %v356
        %420 = vmatprep.subr.mxu0 0.0
        %421 = vmatpush2.msra.mxu0 0.0
        %422 = vmatprep.subr.mxu0 0.0
        %423 = vmatpush2.msra.mxu0 0.0
        %424 = vmatprep.subr.mxu0 0.0
        %425 = vmatpush2.msra.mxu0 0.0
        %426 = vmatprep.subr.mxu0 0.0
        %427 = vmatpush2.msra.mxu0 0.0
        %428 = vmatprep.subr.mxu0 0.0
        %429 = vmatpush2.msra.mxu0 0.0
        %430 = vmatprep.subr.mxu0 0.0
        %431 = vmatpush2.msra.mxu0 0.0
        %432 = vmatprep.subr.mxu0 0.0
        %433 = vmatpush2.msra.mxu0 0.0
        %434 = vmatprep.subr.mxu0 0.0
        %435 = vmatpush2.msra.mxu0 0.0
        %436 = vmatprep.subr.mxu0 0.0
        %437 = vmatpush2.msra.mxu0 0.0
        %438 = vmatprep.subr.mxu0 0.0
        %439 = vmatpush2.msra.mxu0 0.0
        %440 = vmatprep.subr.mxu0 0.0
        %441 = vmatpush2.msra.mxu0 0.0
        %442 = vmatprep.subr.mxu0 0.0
        %443 = vmatpush2.msra.mxu0 0.0
        %444 = vmatprep.subr.mxu0 0.0
        %445 = vmatpush2.msra.mxu0 0.0
        %446 = vmatprep.subr.mxu0 0.0
        %447 = vmatpush2.msra.mxu0 0.0
        %448 = vmatprep.subr.mxu0 0.0
        %449 = vmatpush2.msra.mxu0 0.0
        %450 = vmatprep.subr.mxu0 0.0
        %451 = vmatpush2.msra.mxu0 0.0
        %452 = vmatprep.mubr.f32.mxu0 0.0
        %453 = vmatmul.mubr.f32.gmra.mxu0 %v348
        %v454 = vpop.f32.mrf.mxu0
        %v455 = vadd.f32 0.0, %v454
        %v456 = vpop.f32.mrf.mxu0
        %v457 = vadd.f32 0.0, %v456
        %458 = vmatprep.mubr.f32.mxu0 0.0
        %459 = vmatmul.mubr.f32.gmra.mxu0 %v349
        %v460 = vpop.f32.mrf.mxu0
        %v461 = vadd.f32 0.0, %v460
        %v462 = vpop.f32.mrf.mxu0
        %v463 = vadd.f32 0.0, %v462
        %464 = vmatprep.mubr.f32.mxu0 0.0
        %465 = vmatmul.mubr.f32.gmra.mxu0 %v350
        %v466 = vpop.f32.mrf.mxu0
        %v467 = vadd.f32 0.0, %v466
        %v468 = vpop.f32.mrf.mxu0
        %v469 = vadd.f32 0.0, %v468
        %470 = vmatprep.mubr.f32.mxu0 0.0
        %471 = vmatmul.mubr.f32.gmra.mxu0 %v351
        %v472 = vpop.f32.mrf.mxu0
        %v473 = vadd.f32 0.0, %v472
        %v474 = vpop.f32.mrf.mxu0
        %v475 = vadd.f32 0.0, %v474
        %476 = vmatprep.mubr.f32.mxu0 0.0
        %477 = vmatmul.mubr.f32.gmra.mxu0 %v352
        %v478 = vpop.f32.mrf.mxu0
        %v479 = vadd.f32 0.0, %v478
        %v480 = vpop.f32.mrf.mxu0
        %v481 = vadd.f32 0.0, %v480
        %482 = vmatprep.mubr.f32.mxu0 0.0
        %483 = vmatmul.mubr.f32.gmra.mxu0 %v353
        %v484 = vpop.f32.mrf.mxu0
        %v485 = vadd.f32 0.0, %v484
        %v486 = vpop.f32.mrf.mxu0
        %v487 = vadd.f32 0.0, %v486
        %488 = vmatprep.mubr.f32.mxu0 0.0
        %489 = vmatmul.mubr.f32.gmra.mxu0 %v354
        %v490 = vpop.f32.mrf.mxu0
        %v491 = vadd.f32 0.0, %v490
        %v492 = vpop.f32.mrf.mxu0
        %v493 = vadd.f32 0.0, %v492
        %494 = vmatprep.mubr.f32.mxu0 0.0
        %495 = vmatmul.mubr.f32.gmra.mxu0 %v355
        %v496 = vpop.f32.mrf.mxu0
        %v497 = vadd.f32 0.0, %v496
        %v498 = vpop.f32.mrf.mxu0
        %v499 = vadd.f32 0.0, %v498
        %500 = vdwg.mxu0
        %v501 = vadd.f32 %v332, %v455
        %v502 = vadd.f32 %v333, %v457
        %v503 = vadd.f32 %v334, %v461
        %v504 = vadd.f32 %v335, %v463
        %v505 = vadd.f32 %v336, %v467
        %v506 = vadd.f32 %v337, %v469
        %v507 = vadd.f32 %v338, %v473
        %v508 = vadd.f32 %v339, %v475
        %v509 = vadd.f32 %v340, %v479
        %v510 = vadd.f32 %v341, %v481
        %v511 = vadd.f32 %v342, %v485
        %v512 = vadd.f32 %v343, %v487
        %v513 = vadd.f32 %v344, %v491
        %v514 = vadd.f32 %v345, %v493
        %v515 = vadd.f32 %v346, %v497
        %v516 = vadd.f32 %v347, %v499
        %517 = vst [vmem:[%s293] sm:$0xff] %v501
        %518 = vst [vmem:[%s293 + $0x8] sm:$0xff] %v502
        %519 = vst [vmem:[%s293 + $0x10] sm:$0xff] %v503
        %520 = vst [vmem:[%s293 + $0x18] sm:$0xff] %v504
        %521 = vst [vmem:[%s293 + $0x20] sm:$0xff] %v505
        %522 = vst [vmem:[%s293 + $0x28] sm:$0xff] %v506
        %523 = vst [vmem:[%s293 + $0x30] sm:$0xff] %v507
        %524 = vst [vmem:[%s293 + $0x38] sm:$0xff] %v508
        %525 = vst [vmem:[%s293 + $0x40] sm:$0xff] %v509
        %526 = vst [vmem:[%s293 + $0x48] sm:$0xff] %v510
        %527 = vst [vmem:[%s293 + $0x50] sm:$0xff] %v511
        %528 = vst [vmem:[%s293 + $0x58] sm:$0xff] %v512
        %529 = vst [vmem:[%s293 + $0x60] sm:$0xff] %v513
        %530 = vst [vmem:[%s293 + $0x68] sm:$0xff] %v514
        %531 = vst [vmem:[%s293 + $0x70] sm:$0xff] %v515
        %532 = vst [vmem:[%s293 + $0x78] sm:$0xff] %v516
        %s533 = sand.u32 %s134, 1
        %s534 = scalar_lea.sflag [#allocation4], %s533
        %s535 = sand.u32 %s134, 1
        %s536 = smul.addr %s535, 128
        %s537 = scalar_lea.vmem [#allocation8], %s536
        // Predicated region
        $region49: #{tpu_custom_call.1} parent=31 // pred_check
          %p538 = pneg %p144
        $region50: #{tpu_custom_call.1} parent=31 // pred_check_branch
          %540 = sbr.rel (%p538) target = $region52
        $region51: #{tpu_custom_call.1} parent=31 // pred_region
          %s541 = smul.u32 8, %s28
          %s542 = smul.u32 2, %s29
          %s544 = ssub.s32 2048, 2048
          %545 = vsyncadd %s534, %s544
          %s546 = smul.addr %s541, 4
          %s547 = sadd.s32 %s542, %s546
          %s548 = smul.addr %s547, 128
          %s549 = scalar_lea.hbm %s3, %s548
          %s550 = sshll.u32 %s537, 4
          %s551 = int_to_ptr.vmem [resolvable:$true] %s550
          %556 = dma.vmem_to_hbm [thread:$0]  %s551, 2048, %s549, %s534, 256, 512, 16
        $region52: #{tpu_custom_call.1} parent=31 // pred_fallthru
          _
      $region32: #{tpu_custom_call.1} parent=5 // pred_fallthru
        _
      %p557 = scmp.le.s32.totalorder 2, %s18
      // Predicated region
      $region53: #{tpu_custom_call.1} parent=5 // pred_check
        %p558 = pneg %p557
      $region54: #{tpu_custom_call.1} parent=5 // pred_check_branch
        %560 = sbr.rel (%p558) target = $region56
      $region55: #{tpu_custom_call.1} parent=5 // pred_region
        %s561 = ssub.s32 %s18, 2
        // Predicated region
        $region57: #{tpu_custom_call.1} parent=55 // pred_check
          %p562 = pneg %p150
        $region58: #{tpu_custom_call.1} parent=55 // pred_check_branch
          %564 = sbr.rel (%p562) target = $region60
        $region59: #{tpu_custom_call.1} parent=55 // pred_region
          %s565 = sand.u32 %s135, 1
          %s566 = scalar_lea.sflag [#allocation4], %s565
          %s567 = sand.u32 %s135, 1
          %s568 = smul.addr %s567, 128
          %s569 = scalar_lea.vmem [#allocation8], %s568
          %570 = dma.done %s566, 2048
        $region60: #{tpu_custom_call.1} parent=55 // pred_fallthru
          _
      $region56: #{tpu_custom_call.1} parent=5 // pred_fallthru
        _
    $region6: #{tpu_custom_call.1} parent=1 // loop_footer
      %s22 = sadd.s32 1, %s18
    $region7: #{tpu_custom_call.1} parent=1 // loop_footer_branch
      %17 = sbr.rel target = $region3
    $region8: #{tpu_custom_call.1} parent=1 // loop_exit
      _
    %571 = vsyncpa [#allocation3], 1
    %s572 = scalar_lea.sflag [#allocation3], 1
    %573 = vsyncpa %s572, 1
    %574 = vsyncpa [#allocation6], 1
    %s575 = scalar_lea.sflag [#allocation6], 1
    %576 = vsyncpa %s575, 1
    %577 = vsyncpa [#allocation4], 1
    %s578 = scalar_lea.sflag [#allocation4], 1
    %579 = vsyncpa %s578, 1

</llo_original>
